<compile_context>
chip_gen: v6e
topology: v6e:2x2x1
jax: 0.10.0
libtpu: 0.0.40
codegen_flags: <defaults>
</compile_context>

<pallas_src>
import functools

import jax
import jax.numpy as jnp
from jax import lax
from jax.experimental import pallas as pl
from jax.experimental.pallas import tpu as pltpu

_LANES = 128
_TM_MAX = 8192                      # rows per block (multiple of 8)
_NUM_CORES = 2                      # leading "parallel" axis (v7x megacore)
_VMEM_LIMIT_BYTES = 32 * 1024 * 1024


def _partial_sums_kernel(x_ref, y_ref, out_ref,
                         acc_yp, acc_u, acc_b, *,
                         tm, bpc, mask_start_g, total_g,
                         full_rows, rem, acc_sub):
    c = pl.program_id(0)          # core-split index ("parallel")
    i = pl.program_id(1)          # block index within this core's range

    @pl.when(i == 0)
    def _init():
        acc_yp[...] = jnp.zeros_like(acc_yp)
        acc_u[...] = jnp.zeros_like(acc_u)
        acc_b[...] = jnp.zeros_like(acc_b)

    def _compress(v):
        # Sublane-group reduction (tm,128) -> (8,128): cross-vreg VALU adds,
        # keeps accumulator traffic independent of tm. No-op for tiny blocks.
        if acc_sub > 1:
            return v.reshape(acc_sub, 8, _LANES).sum(axis=0)
        return v

    def _accumulate(x, y):
        # One shared exp(-|x|) feeds both stable sigmoid and BCE log term.
        e = jnp.exp(-jnp.abs(x))
        d = 1.0 / (1.0 + e)
        p = jnp.where(x >= 0.0, d, e * d)                   # == sigmoid(x)
        bce = jnp.maximum(x, 0.0) - x * y + jnp.log1p(e)    # BCEWithLogits elem
        acc_yp[...] += _compress(y * p)                     # intersection
        acc_u[...] += _compress(p + y)                      # union (p.sum+t.sum)
        acc_b[...] += _compress(bce)                        # bce element sum

    def _fast_body():
        _accumulate(x_ref[...].astype(jnp.float32),
                    y_ref[...].astype(jnp.float32))

    def _masked_body():
        # Invalid rows/lanes (tail or wrapped duplicate block) become
        # -1e30 / 0.0, which contribute exactly zero to every partial sum
        # (sigmoid->0, max->0, x*y->-0.0, log1p->0).
        # TODO(synk): int32 row indexing limits masking to n < 2^31 elements.
        g = c * bpc + i
        x = x_ref[...].astype(jnp.float32)
        y = y_ref[...].astype(jnp.float32)
        row_idx = g * tm + lax.broadcasted_iota(jnp.int32, x.shape, 0)
        lane_idx = lax.broadcasted_iota(jnp.int32, x.shape, 1)
        valid = (row_idx < full_rows) | ((row_idx == full_rows) &
                                         (lane_idx < rem))
        _accumulate(jnp.where(valid, x, -1e30), jnp.where(valid, y, 0.0))

    if mask_start_g >= total_g:
        # Coverage is exact: no mask code emitted at all.
        _fast_body()
    elif mask_start_g == 0:
        # Single (partial) block: always masked.
        _masked_body()
    else:
        g = c * bpc + i
        pl.when(g < mask_start_g)(_fast_body)
        pl.when(g >= mask_start_g)(_masked_body)

    @pl.when(i == pl.num_programs(1) - 1)
    def _finalize():
        out_ref[0, 0] = jnp.sum(acc_yp[...])   # sum(t * sigmoid(x))
        out_ref[0, 1] = jnp.sum(acc_u[...])    # sum(sigmoid(x)) + sum(t)
        out_ref[0, 2] = jnp.sum(acc_b[...])    # bce element sum


def joint_dice_bce_with_logits_loss(output, target, alpha, smooth=1e-6):
    """Pallas TPU implementation of JointDiceBCEWithLogitsLoss.forward."""
    x = output.reshape(-1)     # native dtype; no wrapper-side cast
    y = target.reshape(-1)
    n = x.shape[0]

    lane_pad = (-n) % _LANES
    if lane_pad:
        # Rare path (n not a multiple of 128): pad values are masked in-kernel.
        x = jnp.pad(x, (0, lane_pad))
        y = jnp.pad(y, (0, lane_pad))
    rows = (n + lane_pad) // _LANES
    xm = x.reshape(rows, _LANES)
    ym = y.reshape(rows, _LANES)

    # Block rows: as large as possible, rounded down to a multiple of 8 so the
    # (8,128) constraint holds and the sublane compression applies.
    tm = min(rows, _TM_MAX)
    if tm >= 8:
        tm -= tm % 8
    nblocks = -(-rows // tm)                           # ceil
    num_cores = _NUM_CORES if nblocks >= _NUM_CORES else 1
    bpc = -(-nblocks // num_cores)                     # blocks per core
    total_g = num_cores * bpc
    mask_start_g = n // (tm * _LANES)                  # first block needing mask
    full_rows, rem = divmod(n, _LANES)
    acc_sub = tm // 8 if tm % 8 == 0 else 1
    acc_rows = 8 if tm % 8 == 0 else tm

    def block_map(c, i):
        # Logical block c*bpc + i; the (at most one) overflow block wraps onto a
        # valid block and is fully masked inside the kernel.
        return ((c * bpc + i) % nblocks, 0)

    kernel = functools.partial(
        _partial_sums_kernel,
        tm=tm, bpc=bpc, mask_start_g=mask_start_g, total_g=total_g,
        full_rows=full_rows, rem=rem, acc_sub=acc_sub)

    partials = pl.pallas_call(
        kernel,
        out_shape=jax.ShapeDtypeStruct((num_cores, 3), jnp.float32),
        grid_spec=pltpu.PrefetchScalarGridSpec(
            num_scalar_prefetch=0,
            grid=(num_cores, bpc),
            in_specs=[
                pl.BlockSpec((tm, _LANES), block_map),
                pl.BlockSpec((tm, _LANES), block_map),
            ],
            out_specs=pl.BlockSpec((1, 3), lambda c, i: (c, 0),
                                   memory_space=pltpu.SMEM),
            scratch_shapes=[pltpu.VMEM((acc_rows, _LANES), jnp.float32)] * 3,
        ),
        compiler_params=pltpu.CompilerParams(
            dimension_semantics=("parallel", "arbitrary"),
            vmem_limit_bytes=_VMEM_LIMIT_BYTES),
    )(xm, ym)

    # Combine per-core partial sums; trivial scalar finalize in JAX.
    sums = jnp.sum(partials, axis=0)
    inter, union, bsum = sums[0], sums[1], sums[2]
    dice = 1.0 - (2.0 * inter + smooth) / (union + smooth)
    bce = bsum / n
    return alpha * dice + (1.0 - alpha) * bce


def _reference(output, target, alpha, smooth=1e-6):
    x = output.astype(jnp.float32)
    y = target.astype(jnp.float32)
    p = jax.nn.sigmoid(x)
    inter = jnp.sum(y * p)
    union = jnp.sum(p) + jnp.sum(y)
    dice = 1.0 - (2.0 * inter + smooth) / (union + smooth)
    bce = jnp.mean(jnp.maximum(x, 0.0) - x * y + jnp.log1p(jnp.exp(-jnp.abs(x))))
    return alpha * dice + (1.0 - alpha) * bce


if __name__ == "__main__":
    key = jax.random.PRNGKey(0)
    k1, k2 = jax.random.split(key)

    # NCHW-shaped logits and binary targets, small shapes.
    B, C, H, W = 2, 4, 16, 16
    logits = jax.random.normal(k1, (B, C, H, W), dtype=jnp.float32) * 2.0
    target = (jax.random.uniform(k2, (B, C, H, W)) > 0.5).astype(jnp.float32)

    alpha = 0.7
    loss = joint_dice_bce_with_logits_loss(logits, target, alpha)
    loss = jax.block_until_ready(loss)

    ref = _reference(logits, target, alpha)
    assert jnp.allclose(loss, ref, atol=1e-5, rtol=1e-5), (loss, ref)

    print("KERNEL_OK")
</pallas_src>

<mosaic_0001>
module attributes {stable_mosaic.version = 11 : i64} {
  func.func @_partial_sums_kernel(%arg0: i32, %arg1: i32, %arg2: memref<16x128xf32, #tpu.memory_space<vmem>>, %arg3: memref<16x128xf32, #tpu.memory_space<vmem>>, %arg4: memref<1x3xf32, #tpu.memory_space<smem>>, %arg5: memref<8x128xf32, #tpu.memory_space<vmem>>, %arg6: memref<8x128xf32, #tpu.memory_space<vmem>>, %arg7: memref<8x128xf32, #tpu.memory_space<vmem>>) attributes {dimension_semantics = [#tpu.dimension_semantics<parallel>, #tpu.dimension_semantics<arbitrary>], iteration_bounds = array<i64: 1, 1>, scalar_prefetch = 0 : i64, scratch_operands = 3 : i64, tpu.core_type = #tpu.core_type<tc>, window_params = [{transform_indices = @transform_0, window_bounds = array<i64: 16, 128>}, {transform_indices = @transform_1, window_bounds = array<i64: 16, 128>}, {transform_indices = @transform_2, window_bounds = array<i64: 1, 3>}]} {
    %c0_i32 = arith.constant 0 : i32
    %0 = arith.cmpi eq, %arg1, %c0_i32 : i32
    %1 = arith.extui %0 : i1 to i32
    %c0_i32_0 = arith.constant 0 : i32
    %2 = arith.cmpi ne, %1, %c0_i32_0 : i32
    scf.if %2 {
      %cst_25 = arith.constant 0.000000e+00 : f32
      %43 = vector.broadcast %cst_25 : f32 to vector<8x128xf32>
      %c0_26 = arith.constant 0 : index
      %c0_27 = arith.constant 0 : index
      %44 = vector.load %arg5[%c0_26, %c0_27] : memref<8x128xf32, #tpu.memory_space<vmem>>, vector<8x128xf32>
      tpu.vector_store %arg5[%c0_26, %c0_27], %43 {strides = array<i32>} : memref<8x128xf32, #tpu.memory_space<vmem>>, vector<8x128xf32>,
      %cst_28 = arith.constant 0.000000e+00 : f32
      %45 = vector.broadcast %cst_28 : f32 to vector<8x128xf32>
      %c0_29 = arith.constant 0 : index
      %c0_30 = arith.constant 0 : index
      %46 = vector.load %arg6[%c0_29, %c0_30] : memref<8x128xf32, #tpu.memory_space<vmem>>, vector<8x128xf32>
      tpu.vector_store %arg6[%c0_29, %c0_30], %45 {strides = array<i32>} : memref<8x128xf32, #tpu.memory_space<vmem>>, vector<8x128xf32>,
      %cst_31 = arith.constant 0.000000e+00 : f32
      %47 = vector.broadcast %cst_31 : f32 to vector<8x128xf32>
      %c0_32 = arith.constant 0 : index
      %c0_33 = arith.constant 0 : index
      %48 = vector.load %arg7[%c0_32, %c0_33] : memref<8x128xf32, #tpu.memory_space<vmem>>, vector<8x128xf32>
      tpu.vector_store %arg7[%c0_32, %c0_33], %47 {strides = array<i32>} : memref<8x128xf32, #tpu.memory_space<vmem>>, vector<8x128xf32>,
    } else {
    }
    %c0 = arith.constant 0 : index
    %c0_1 = arith.constant 0 : index
    %3 = vector.load %arg2[%c0, %c0_1] : memref<16x128xf32, #tpu.memory_space<vmem>>, vector<16x128xf32>
    %c0_2 = arith.constant 0 : index
    %c0_3 = arith.constant 0 : index
    %4 = vector.load %arg3[%c0_2, %c0_3] : memref<16x128xf32, #tpu.memory_space<vmem>>, vector<16x128xf32>
    %5 = math.absf %3 : vector<16x128xf32>
    %cst = arith.constant 0.000000e+00 : f32
    %6 = vector.broadcast %cst : f32 to vector<16x128xf32>
    %7 = arith.subf %6, %5 : vector<16x128xf32>
    %8 = math.exp %7 : vector<16x128xf32>
    %cst_4 = arith.constant 1.000000e+00 : f32
    %9 = vector.broadcast %cst_4 : f32 to vector<16x128xf32>
    %10 = arith.addf %9, %8 : vector<16x128xf32>
    %cst_5 = arith.constant 1.000000e+00 : f32
    %11 = vector.broadcast %cst_5 : f32 to vector<16x128xf32>
    %12 = arith.divf %11, %10 : vector<16x128xf32>
    %cst_6 = arith.constant 0.000000e+00 : f32
    %13 = vector.broadcast %cst_6 : f32 to vector<16x128xf32>
    %14 = arith.cmpf oge, %3, %13 : vector<16x128xf32>
    %15 = arith.mulf %8, %12 : vector<16x128xf32>
    %16 = arith.select %14, %12, %15 : vector<16x128xi1>, vector<16x128xf32>
    %cst_7 = arith.constant 0.000000e+00 : f32
    %17 = vector.broadcast %cst_7 : f32 to vector<16x128xf32>
    %18 = arith.maximumf %3, %17 : vector<16x128xf32>
    %19 = arith.mulf %3, %4 : vector<16x128xf32>
    %20 = arith.subf %18, %19 : vector<16x128xf32>
    %21 = math.log1p %8 : vector<16x128xf32>
    %22 = arith.addf %20, %21 : vector<16x128xf32>
    %c0_8 = arith.constant 0 : index
    %c0_9 = arith.constant 0 : index
    %23 = vector.load %arg5[%c0_8, %c0_9] : memref<8x128xf32, #tpu.memory_space<vmem>>, vector<8x128xf32>
    %24 = arith.mulf %4, %16 : vector<16x128xf32>
    %25 = vector.shape_cast %24 : vector<16x128xf32> to vector<2x8x128xf32>
    %cst_10 = arith.constant dense<0.000000e+00> : vector<8x128xf32>
    %26 = vector.multi_reduction <add>, %25, %cst_10 [0] : vector<2x8x128xf32> to vector<8x128xf32>
    %27 = arith.addf %23, %26 : vector<8x128xf32>
    %c0_11 = arith.constant 0 : index
    %c0_12 = arith.constant 0 : index
    %28 = vector.load %arg5[%c0_11, %c0_12] : memref<8x128xf32, #tpu.memory_space<vmem>>, vector<8x128xf32>
    tpu.vector_store %arg5[%c0_11, %c0_12], %27 {strides = array<i32>} : memref<8x128xf32, #tpu.memory_space<vmem>>, vector<8x128xf32>,
    %c0_13 = arith.constant 0 : index
    %c0_14 = arith.constant 0 : index
    %29 = vector.load %arg6[%c0_13, %c0_14] : memref<8x128xf32, #tpu.memory_space<vmem>>, vector<8x128xf32>
    %30 = arith.addf %16, %4 : vector<16x128xf32>
    %31 = vector.shape_cast %30 : vector<16x128xf32> to vector<2x8x128xf32>
    %cst_15 = arith.constant dense<0.000000e+00> : vector<8x128xf32>
    %32 = vector.multi_reduction <add>, %31, %cst_15 [0] : vector<2x8x128xf32> to vector<8x128xf32>
    %33 = arith.addf %29, %32 : vector<8x128xf32>
    %c0_16 = arith.constant 0 : index
    %c0_17 = arith.constant 0 : index
    %34 = vector.load %arg6[%c0_16, %c0_17] : memref<8x128xf32, #tpu.memory_space<vmem>>, vector<8x128xf32>
    tpu.vector_store %arg6[%c0_16, %c0_17], %33 {strides = array<i32>} : memref<8x128xf32, #tpu.memory_space<vmem>>, vector<8x128xf32>,
    %c0_18 = arith.constant 0 : index
    %c0_19 = arith.constant 0 : index
    %35 = vector.load %arg7[%c0_18, %c0_19] : memref<8x128xf32, #tpu.memory_space<vmem>>, vector<8x128xf32>
    %36 = vector.shape_cast %22 : vector<16x128xf32> to vector<2x8x128xf32>
    %cst_20 = arith.constant dense<0.000000e+00> : vector<8x128xf32>
    %37 = vector.multi_reduction <add>, %36, %cst_20 [0] : vector<2x8x128xf32> to vector<8x128xf32>
    %38 = arith.addf %35, %37 : vector<8x128xf32>
    %c0_21 = arith.constant 0 : index
    %c0_22 = arith.constant 0 : index
    %39 = vector.load %arg7[%c0_21, %c0_22] : memref<8x128xf32, #tpu.memory_space<vmem>>, vector<8x128xf32>
    tpu.vector_store %arg7[%c0_21, %c0_22], %38 {strides = array<i32>} : memref<8x128xf32, #tpu.memory_space<vmem>>, vector<8x128xf32>,
    %c0_i32_23 = arith.constant 0 : i32
    %40 = arith.cmpi eq, %arg1, %c0_i32_23 : i32
    %41 = arith.extui %40 : i1 to i32
    %c0_i32_24 = arith.constant 0 : i32
    %42 = arith.cmpi ne, %41, %c0_i32_24 : i32
    scf.if %42 {
      %c0_25 = arith.constant 0 : index
      %c0_26 = arith.constant 0 : index
      %43 = vector.load %arg5[%c0_25, %c0_26] : memref<8x128xf32, #tpu.memory_space<vmem>>, vector<8x128xf32>
      %44 = vector.shape_cast %43 : vector<8x128xf32> to vector<1x8x128xf32>
      %cst_27 = arith.constant dense<0.000000e+00> : vector<1xf32>
      %45 = vector.multi_reduction <add>, %44, %cst_27 [1, 2] : vector<1x8x128xf32> to vector<1xf32>
      %46 = vector.shape_cast %45 : vector<1xf32> to vector<1x1x1xf32>
      %47 = vector.extract %46[0, 0, 0] : f32 from vector<1x1x1xf32>
      %c0_28 = arith.constant 0 : index
      %c0_29 = arith.constant 0 : index
      %48 = memref.load %arg4[%c0_28, %c0_29] : memref<1x3xf32, #tpu.memory_space<smem>>
      memref.store %47, %arg4[%c0_28, %c0_29] : memref<1x3xf32, #tpu.memory_space<smem>>
      %c0_30 = arith.constant 0 : index
      %c0_31 = arith.constant 0 : index
      %49 = vector.load %arg6[%c0_30, %c0_31] : memref<8x128xf32, #tpu.memory_space<vmem>>, vector<8x128xf32>
      %50 = vector.shape_cast %49 : vector<8x128xf32> to vector<1x8x128xf32>
      %cst_32 = arith.constant dense<0.000000e+00> : vector<1xf32>
      %51 = vector.multi_reduction <add>, %50, %cst_32 [1, 2] : vector<1x8x128xf32> to vector<1xf32>
      %52 = vector.shape_cast %51 : vector<1xf32> to vector<1x1x1xf32>
      %53 = vector.extract %52[0, 0, 0] : f32 from vector<1x1x1xf32>
      %c0_33 = arith.constant 0 : index
      %c1 = arith.constant 1 : index
      %54 = memref.load %arg4[%c0_33, %c1] : memref<1x3xf32, #tpu.memory_space<smem>>
      memref.store %53, %arg4[%c0_33, %c1] : memref<1x3xf32, #tpu.memory_space<smem>>
      %c0_34 = arith.constant 0 : index
      %c0_35 = arith.constant 0 : index
      %55 = vector.load %arg7[%c0_34, %c0_35] : memref<8x128xf32, #tpu.memory_space<vmem>>, vector<8x128xf32>
      %56 = vector.shape_cast %55 : vector<8x128xf32> to vector<1x8x128xf32>
      %cst_36 = arith.constant dense<0.000000e+00> : vector<1xf32>
      %57 = vector.multi_reduction <add>, %56, %cst_36 [1, 2] : vector<1x8x128xf32> to vector<1xf32>
      %58 = vector.shape_cast %57 : vector<1xf32> to vector<1x1x1xf32>
      %59 = vector.extract %58[0, 0, 0] : f32 from vector<1x1x1xf32>
      %c0_37 = arith.constant 0 : index
      %c2 = arith.constant 2 : index
      %60 = memref.load %arg4[%c0_37, %c2] : memref<1x3xf32, #tpu.memory_space<smem>>
      memref.store %59, %arg4[%c0_37, %c2] : memref<1x3xf32, #tpu.memory_space<smem>>
    } else {
    }
    return
  }
  func.func @transform_0(%arg0: i32, %arg1: i32) -> (i32, i32) {
    %c1_i32 = arith.constant 1 : i32
    %0 = arith.muli %arg0, %c1_i32 : i32
    %1 = arith.addi %0, %arg1 : i32
    %c1_i32_0 = arith.constant 1 : i32
    %c0_i32 = arith.constant 0 : i32
    %2 = arith.cmpi eq, %c1_i32_0, %c0_i32 : i32
    %c1_i32_1 = arith.constant 1 : i32
    %3 = arith.select %2, %c1_i32_1, %c1_i32_0 : i32
    %4 = arith.remsi %1, %3 : i32
    %c0_i32_2 = arith.constant 0 : i32
    %5 = arith.cmpi ne, %4, %c0_i32_2 : i32
    %c0_i32_3 = arith.constant 0 : i32
    %6 = arith.cmpi slt, %4, %c0_i32_3 : i32
    %c0_i32_4 = arith.constant 0 : i32
    %7 = arith.cmpi slt, %3, %c0_i32_4 : i32
    %8 = arith.xori %6, %7 : i1
    %9 = arith.andi %8, %5 : i1
    %10 = arith.addi %4, %3 : i32
    %11 = arith.select %9, %10, %4 : i32
    %c0_i32_5 = arith.constant 0 : i32
    %c0_i32_6 = arith.constant 0 : i32
    return %11, %c0_i32_5 : i32, i32
  }
  func.func @transform_1(%arg0: i32, %arg1: i32) -> (i32, i32) {
    %c1_i32 = arith.constant 1 : i32
    %0 = arith.muli %arg0, %c1_i32 : i32
    %1 = arith.addi %0, %arg1 : i32
    %c1_i32_0 = arith.constant 1 : i32
    %c0_i32 = arith.constant 0 : i32
    %2 = arith.cmpi eq, %c1_i32_0, %c0_i32 : i32
    %c1_i32_1 = arith.constant 1 : i32
    %3 = arith.select %2, %c1_i32_1, %c1_i32_0 : i32
    %4 = arith.remsi %1, %3 : i32
    %c0_i32_2 = arith.constant 0 : i32
    %5 = arith.cmpi ne, %4, %c0_i32_2 : i32
    %c0_i32_3 = arith.constant 0 : i32
    %6 = arith.cmpi slt, %4, %c0_i32_3 : i32
    %c0_i32_4 = arith.constant 0 : i32
    %7 = arith.cmpi slt, %3, %c0_i32_4 : i32
    %8 = arith.xori %6, %7 : i1
    %9 = arith.andi %8, %5 : i1
    %10 = arith.addi %4, %3 : i32
    %11 = arith.select %9, %10, %4 : i32
    %c0_i32_5 = arith.constant 0 : i32
    %c0_i32_6 = arith.constant 0 : i32
    return %11, %c0_i32_5 : i32, i32
  }
  func.func @transform_2(%arg0: i32, %arg1: i32) -> (i32, i32) {
    %c0_i32 = arith.constant 0 : i32
    %c0_i32_0 = arith.constant 0 : i32
    return %arg0, %c0_i32 : i32, i32
  }
}

</mosaic_0001>

<llo_original>
// kernel: tpu_custom_call.1
$region0: #{tpu_custom_call.1}
  #allocation0 [shape = 'u32[]', space=smem, size = 0x4, offset = 0x4, fixed_abs, tag = 'smem constant byte address 0x4 - core index']
  #allocation1 [shape = 'u32[144,128]{1,0:T(1,128)}', space=vmem, size = 0x12000, scoped, tag = 'internal scratch']
  #allocation2 [shape = 'f32[8,128]{1,0:T(8,128)}', space=vmem, size = 0x1000, scoped, tag = 'scratch operand']
  #allocation3 [shape = 'f32[8,128]{1,0:T(8,128)}', space=vmem, size = 0x1000, scoped, tag = 'scratch operand']
  #allocation4 [shape = 'f32[8,128]{1,0:T(8,128)}', space=vmem, size = 0x1000, scoped, tag = 'scratch operand']
  %s0 = inlined_call_operand.hbm [shape: f32[16,128], index: 0, kind: input, shape index: {}]
  %s1 = inlined_call_operand.hbm [shape: f32[16,128], index: 1, kind: input, shape index: {}]
  %s2 = inlined_call_operand.hbm [shape: f32[1,3], index: 2, kind: output, shape index: {}]
  %s3 = sld [smem:[#allocation0]]
  $region34: #{tpu_custom_call.1} parent=0
    _
  %s5 = ssub.s32 1, %s3
  %s6 = scalar_select 0, %s5, %s3
  $region1: #{tpu_custom_call.1} parent=0
    #allocation5 [shape = 'u8[8192]{0}', space=vmem, size = 0x2000, scoped, tag = 'input window, operand 0, single buffered']
    #allocation6 [shape = 's32[1]{0}', space=sflag, size = 0x4, scoped, tag = 'scoped memory for tpu_custom_call.1']
    #allocation7 [shape = 's32[1]{0}', space=sflag, size = 0x4, scoped, tag = 'scoped memory for tpu_custom_call.1']
    #allocation8 [shape = 'u8[8192]{0}', space=vmem, size = 0x2000, scoped, tag = 'input window, operand 1, single buffered']
    #allocation9 [shape = 's32[1]{0}', space=sflag, size = 0x4, scoped, tag = 'scoped memory for tpu_custom_call.1']
    #allocation10 [shape = 'u8[512]{0}', space=smem, size = 0x200, scoped, tag = 'output window, operand 0, single buffered']
    %7 = vsyncpa [#allocation6], 0
    %8 = vsyncpa [#allocation9], 0
    %9 = vsyncpa [#allocation7], 0
    // Predicated region
    $region2: #{tpu_custom_call.1} parent=1 // pred_check
      _
    $region3: #{tpu_custom_call.1} parent=1 // pred_check_branch
      %11 = sbr.rel (0) target = $region5
    $region4: #{tpu_custom_call.1} parent=1 // pred_region
      %s13 = ssub.s32 256, 256
      %14 = vsyncadd [#allocation6], %s13
      %s15 = sshll.u32 [#allocation5], 4
      %s16 = int_to_ptr.vmem [resolvable:$true] %s15
      %21 = dma.hbm_to_vmem [thread:$0]  %s0, 256, %s16, [#allocation6], 128, 128, 8
    $region5: #{tpu_custom_call.1} parent=1 // pred_fallthru
      _
    // Predicated region
    $region6: #{tpu_custom_call.1} parent=1 // pred_check
      _
    $region7: #{tpu_custom_call.1} parent=1 // pred_check_branch
      %23 = sbr.rel (0) target = $region9
    $region8: #{tpu_custom_call.1} parent=1 // pred_region
      %s25 = ssub.s32 256, 256
      %26 = vsyncadd [#allocation9], %s25
      %s27 = sshll.u32 [#allocation8], 4
      %s28 = int_to_ptr.vmem [resolvable:$true] %s27
      %33 = dma.hbm_to_vmem [thread:$0]  %s1, 256, %s28, [#allocation9], 128, 128, 8
    $region9: #{tpu_custom_call.1} parent=1 // pred_fallthru
      _
    // Predicated region
    $region10: #{tpu_custom_call.1} parent=1 // pred_check
      _
    $region11: #{tpu_custom_call.1} parent=1 // pred_check_branch
      %35 = sbr.rel (0) target = $region13
    $region12: #{tpu_custom_call.1} parent=1 // pred_region
      %36 = dma.done [#allocation6], 256
    $region13: #{tpu_custom_call.1} parent=1 // pred_fallthru
      _
    // Predicated region
    $region14: #{tpu_custom_call.1} parent=1 // pred_check
      _
    $region15: #{tpu_custom_call.1} parent=1 // pred_check_branch
      %38 = sbr.rel (0) target = $region17
    $region16: #{tpu_custom_call.1} parent=1 // pred_region
      %39 = dma.done [#allocation9], 256
    $region17: #{tpu_custom_call.1} parent=1 // pred_fallthru
      _
    %p40 = scmp.eq.s32.totalorder 0, 0
    // Predicated region
    $region18: #{tpu_custom_call.1} parent=1 // pred_check
      %p41 = pneg %p40
    $region19: #{tpu_custom_call.1} parent=1 // pred_check_branch
      %43 = sbr.rel (%p41) target = $region21
    $region20: #{tpu_custom_call.1} parent=1 // pred_region
      %44 = vst [vmem:[#allocation2] sm:$0xff] 0.0
      %45 = vst [vmem:[#allocation3] sm:$0xff] 0.0
      %46 = vst [vmem:[#allocation4] sm:$0xff] 0.0
    $region21: #{tpu_custom_call.1} parent=1 // pred_fallthru
      _
    %v47 = vld [vmem:[#allocation5] sm:$0xff]
    %v48 = vld [vmem:[#allocation5 + $0x8] sm:$0xff]
    %v49 = vld [vmem:[#allocation8] sm:$0xff]
    %v50 = vld [vmem:[#allocation8 + $0x8] sm:$0xff]
    %v51 = vand.u32 2147483647, %v47
    %v52 = vand.u32 2147483647, %v48
    %v53 = vsub.f32 0.0, %v51
    %v54 = vsub.f32 0.0, %v52
    %v55 = vmul.f32 %v53, 1.442695
    %v56 = vpow.pop %v55
    %v57 = vmul.f32 %v54, 1.442695
    %v58 = vpow.pop %v57
    %v59 = vadd.f32 %v56, 1.0
    %v60 = vadd.f32 %v58, 1.0
    %v61 = vrcp.pop %v59
    %v62 = vmul.f32 1.0, %v61
    %v63 = vrcp.pop %v60
    %v64 = vmul.f32 1.0, %v63
    %vm65 = vcmp.ge.f32.partialorder %v47, 0.0
    %vm66 = vcmp.ge.f32.partialorder %v48, 0.0
    %v67 = vmul.f32 %v56, %v62
    %v68 = vmul.f32 %v58, %v64
    %v69 = vsel %vm65, %v62, %v67
    %v70 = vsel %vm66, %v64, %v68
    %v71 = vmax.f32 %v47, 0.0
    %v72 = vmax.f32 %v48, 0.0
    %v73 = vmul.f32 %v47, %v49
    %v74 = vmul.f32 %v48, %v50
    %v75 = vsub.f32 %v71, %v73
    %v76 = vsub.f32 %v72, %v74
    %v77 = vadd.f32 %v56, 1.0
    %v78 = vlog2.pop %v77
    %v79 = vmul.f32 %v78, 0.6931472
    %v80 = vmul.f32 -0.5, %v56
    %v81 = vadd.f32 %v80, 1.0
    %v82 = vmul.f32 %v81, %v56
    %v83 = vand.u32 2147483647, %v56
    %vm84 = vcmp.lt.f32.partialorder %v83, 0.0004427343
    %v85 = vsel %vm84, %v82, %v79
    %v86 = vadd.f32 %v58, 1.0
    %v87 = vlog2.pop %v86
    %v88 = vmul.f32 %v87, 0.6931472
    %v89 = vmul.f32 -0.5, %v58
    %v90 = vadd.f32 %v89, 1.0
    %v91 = vmul.f32 %v90, %v58
    %v92 = vand.u32 2147483647, %v58
    %vm93 = vcmp.lt.f32.partialorder %v92, 0.0004427343
    %v94 = vsel %vm93, %v91, %v88
    %v95 = vadd.f32 %v75, %v85
    %v96 = vadd.f32 %v76, %v94
    %v97 = vld [vmem:[#allocation2] sm:$0xff]
    %v98 = vmul.f32 %v49, %v69
    %v99 = vmul.f32 %v50, %v70
    %v100 = vadd.f32 %v98, %v99
    %v101 = vadd.f32 %v97, %v100
    %102 = vst [vmem:[#allocation2] sm:$0xff] %v101
    %v103 = vld [vmem:[#allocation3] sm:$0xff]
    %v104 = vadd.f32 %v69, %v49
    %v105 = vadd.f32 %v70, %v50
    %v106 = vadd.f32 %v104, %v105
    %v107 = vadd.f32 %v103, %v106
    %108 = vst [vmem:[#allocation3] sm:$0xff] %v107
    %v109 = vld [vmem:[#allocation4] sm:$0xff]
    %v110 = vadd.f32 %v95, %v96
    %v111 = vadd.f32 %v109, %v110
    %112 = vst [vmem:[#allocation4] sm:$0xff] %v111
    // Predicated region
    $region22: #{tpu_custom_call.1} parent=1 // pred_check
      %p113 = pneg %p40
    $region23: #{tpu_custom_call.1} parent=1 // pred_check_branch
      %115 = sbr.rel (%p113) target = $region25
    $region24: #{tpu_custom_call.1} parent=1 // pred_region
      %v116 = vld [vmem:[#allocation2] sm:$0xff]
      %117 = vadd.xlane.f32.xlu0 %v116
      %v118 = vpop.xlane.xlu0 %117
      %v119 = vrot.slane %v118, 4
      %v120 = vadd.f32 %v118, %v119
      %v121 = vrot.slane %v120, 2
      %v122 = vadd.f32 %v120, %v121
      %v123 = vrot.slane %v122, 1
      %v124 = vadd.f32 %v122, %v123
      %s125 = vtos %v124
      %s126 = scalar_lea.smem [#allocation10], 0
      %127 = sst [smem:[%s126]] %s125
      %v128 = vld [vmem:[#allocation3] sm:$0xff]
      %129 = vadd.xlane.f32.xlu0 %v128
      %v130 = vpop.xlane.xlu0 %129
      %v131 = vrot.slane %v130, 4
      %v132 = vadd.f32 %v130, %v131
      %v133 = vrot.slane %v132, 2
      %v134 = vadd.f32 %v132, %v133
      %v135 = vrot.slane %v134, 1
      %v136 = vadd.f32 %v134, %v135
      %s137 = vtos %v136
      %s138 = scalar_lea.smem [#allocation10], 1
      %139 = sst [smem:[%s138]] %s137
      %v140 = vld [vmem:[#allocation4] sm:$0xff]
      %141 = vadd.xlane.f32.xlu0 %v140
      %v142 = vpop.xlane.xlu0 %141
      %v143 = vrot.slane %v142, 4
      %v144 = vadd.f32 %v142, %v143
      %v145 = vrot.slane %v144, 2
      %v146 = vadd.f32 %v144, %v145
      %v147 = vrot.slane %v146, 1
      %v148 = vadd.f32 %v146, %v147
      %s149 = vtos %v148
      %s150 = scalar_lea.smem [#allocation10], 2
      %151 = sst [smem:[%s150]] %s149
    $region25: #{tpu_custom_call.1} parent=1 // pred_fallthru
      _
    // Predicated region
    $region26: #{tpu_custom_call.1} parent=1 // pred_check
      _
    $region27: #{tpu_custom_call.1} parent=1 // pred_check_branch
      %153 = sbr.rel (0) target = $region29
    $region28: #{tpu_custom_call.1} parent=1 // pred_region
      %s155 = ssub.s32 16, 16
      %156 = vsyncadd [#allocation7], %s155
      %159 = dma.smem_to_hbm [#allocation10], 16, %s2, [#allocation7]
    $region29: #{tpu_custom_call.1} parent=1 // pred_fallthru
      _
    // Predicated region
    $region30: #{tpu_custom_call.1} parent=1 // pred_check
      _
    $region31: #{tpu_custom_call.1} parent=1 // pred_check_branch
      %161 = sbr.rel (0) target = $region33
    $region32: #{tpu_custom_call.1} parent=1 // pred_region
      %162 = dma.done [#allocation7], 16
    $region33: #{tpu_custom_call.1} parent=1 // pred_fallthru
      _
    %163 = sfence
    %164 = vsyncpa [#allocation6], 1
    %165 = vsyncpa [#allocation9], 1
    %166 = vsyncpa [#allocation7], 1

</llo_original>
